<compile_context>
chip_gen: v6e
topology: v6e:2x2x1
jax: 0.10.0
libtpu: 0.0.40
codegen_flags: <defaults>
</compile_context>

<pallas_src>
import functools

import jax
import jax.numpy as jnp
from jax.experimental import pallas as pl
from jax.experimental.pallas import tpu as pltpu


def _round_up(x, m):
    return ((x + m - 1) // m) * m


def _logreg_kernel(x_ref, w_ref, b_ref, o_ref, acc_ref):
    # x_ref: (TB, TK), w_ref: (TK, N_pad), b_ref: (1, N_pad)
    # o_ref: (TB, N_pad), acc_ref: (TB, N_pad) f32 scratch
    k = pl.program_id(1)

    @pl.when(k == 0)
    def _init():
        # Fold the bias into the accumulator init (saves a VPU add pass).
        acc_ref[...] = jnp.broadcast_to(
            b_ref[...].astype(jnp.float32), acc_ref.shape)

    acc_ref[...] += jnp.dot(x_ref[...], w_ref[...],
                            preferred_element_type=jnp.float32)

    @pl.when(k == pl.num_programs(1) - 1)
    def _finalize():
        # Sigmoid in f32 (exp hits the EUP slot), cast on store.
        o_ref[...] = jax.nn.sigmoid(acc_ref[...]).astype(o_ref.dtype)


def prepare_params(weight, bias):
    """One-time parameter prep.

    weight: (output_dim, input_dim) PyTorch nn.Linear layout.
    bias:   (output_dim,)
    Returns (w_t, b2d, output_dim) with w_t: (input_dim, N_pad),
    b2d: (1, N_pad), where N_pad = round_up(output_dim, 128) so the kernel's
    output tile is lane-dense.
    """
    output_dim, input_dim = weight.shape
    n_pad = _round_up(output_dim, 128)
    w_t = jnp.zeros((input_dim, n_pad), weight.dtype)
    w_t = w_t.at[:, :output_dim].set(weight.T)
    b2d = jnp.zeros((1, n_pad), bias.dtype)
    b2d = b2d.at[0, :output_dim].set(bias)
    return w_t, b2d, output_dim


def logistic_regression_fwd(x, w_t, b2d, output_dim,
                            *, block_batch=512, block_k=512):
    """sigmoid(x @ W + b) with W/b pre-prepared by prepare_params."""
    batch, input_dim = x.shape
    n_pad = w_t.shape[1]

    # --- batch tiling: one big lane/sublane-aligned tile per grid step ---
    if batch <= block_batch:
        tb = _round_up(batch, 8)
    else:
        tb = block_batch
    padded_batch = _round_up(batch, tb)

    # --- K tiling: only tile when input_dim is large enough to matter ---
    if input_dim <= 2 * block_k:
        tk = input_dim            # full extent -> no alignment requirement
    else:
        tk = block_k
    padded_k = _round_up(input_dim, tk)

    if padded_batch != batch or padded_k != input_dim:
        x = jnp.pad(x, ((0, padded_batch - batch), (0, padded_k - input_dim)))
    if padded_k != input_dim:
        w_t = jnp.pad(w_t, ((0, padded_k - input_dim), (0, 0)))

    n_batch_blocks = padded_batch // tb
    n_k_blocks = padded_k // tk

    # VMEM budget: 2x (x tile) + 2x (W slice) + 2x (bias) + 2x (out tile) + acc,
    # capped well under v7x's 64 MiB physical VMEM.
    est_bytes = (2 * tb * tk + 2 * tk * n_pad + 2 * n_pad
                 + 2 * tb * n_pad + tb * n_pad) * 4
    vmem_limit = int(min(max(2 * est_bytes, 16 * 1024 * 1024),
                         48 * 1024 * 1024))

    out = pl.pallas_call(
        _logreg_kernel,
        out_shape=jax.ShapeDtypeStruct((padded_batch, n_pad), x.dtype),
        grid_spec=pltpu.PrefetchScalarGridSpec(
            num_scalar_prefetch=0,
            grid=(n_batch_blocks, n_k_blocks),
            in_specs=[
                pl.BlockSpec((tb, tk), lambda i, k: (i, k)),       # x
                pl.BlockSpec((tk, n_pad), lambda i, k: (k, 0)),    # W (resident over i)
                pl.BlockSpec((1, n_pad), lambda i, k: (0, 0)),     # bias (resident)
            ],
            out_specs=pl.BlockSpec((tb, n_pad), lambda i, k: (i, 0)),
            scratch_shapes=[pltpu.VMEM((tb, n_pad), jnp.float32)],
        ),
        compiler_params=pltpu.CompilerParams(
            dimension_semantics=("parallel", "arbitrary"),
            vmem_limit_bytes=vmem_limit,
        ),
    )(x, w_t, b2d)

    return out[:batch, :output_dim]


def logistic_regression(x, weight, bias):
    """Convenience one-shot API matching the PyTorch module's forward.

    For repeated inference, call prepare_params once and reuse the result
    with logistic_regression_fwd (avoids per-call transpose/pad).
    """
    w_t, b2d, output_dim = prepare_params(weight, bias)
    return logistic_regression_fwd(x, w_t, b2d, output_dim)


def init_linear_params(key, input_dim, output_dim):
    """Deterministic init mirroring nn.Linear's uniform(-1/sqrt(in), 1/sqrt(in))."""
    kw, kb = jax.random.split(key)
    bound = 1.0 / jnp.sqrt(jnp.float32(input_dim))
    weight = jax.random.uniform(
        kw, (output_dim, input_dim), jnp.float32, minval=-bound, maxval=bound)
    bias = jax.random.uniform(
        kb, (output_dim,), jnp.float32, minval=-bound, maxval=bound)
    return weight, bias


if __name__ == "__main__":
    key = jax.random.PRNGKey(0)
    k_x, k_p = jax.random.split(key)

    batch, input_dim, output_dim = 8, 32, 16
    x = jax.random.normal(k_x, (batch, input_dim), jnp.float32)
    weight, bias = init_linear_params(k_p, input_dim, output_dim)

    # Prepare parameters once (transpose + lane-dense padding), then run.
    w_t, b2d, out_dim = prepare_params(weight, bias)
    out = logistic_regression_fwd(x, w_t, b2d, out_dim)
    out = jax.block_until_ready(out)

    # Reference check against plain JAX.
    ref = jax.nn.sigmoid(x @ weight.T + bias)
    assert out.shape == (batch, output_dim)
    assert jnp.allclose(out, ref, atol=1e-5, rtol=1e-5)

    print("KERNEL_OK")
</pallas_src>

<mosaic_0001>
module attributes {stable_mosaic.version = 11 : i64} {
  func.func @_logreg_kernel(%arg0: i32, %arg1: i32, %arg2: memref<8x32xf32, #tpu.memory_space<vmem>>, %arg3: memref<32x128xf32, #tpu.memory_space<vmem>>, %arg4: memref<1x128xf32, #tpu.memory_space<vmem>>, %arg5: memref<8x128xf32, #tpu.memory_space<vmem>>, %arg6: memref<8x128xf32, #tpu.memory_space<vmem>>) attributes {dimension_semantics = [#tpu.dimension_semantics<parallel>, #tpu.dimension_semantics<arbitrary>], iteration_bounds = array<i64: 1, 1>, scalar_prefetch = 0 : i64, scratch_operands = 1 : i64, tpu.core_type = #tpu.core_type<tc>, window_params = [{transform_indices = @transform_0, window_bounds = array<i64: 8, 32>}, {transform_indices = @transform_1, window_bounds = array<i64: 32, 128>}, {pipeline_mode = #tpu.pipeline_mode<synchronous>, transform_indices = @transform_2, window_bounds = array<i64: 1, 128>}, {transform_indices = @transform_3, window_bounds = array<i64: 8, 128>}]} {
    %c0_i32 = arith.constant 0 : i32
    %0 = arith.cmpi eq, %arg1, %c0_i32 : i32
    %1 = arith.extui %0 : i1 to i32
    %c0_i32_0 = arith.constant 0 : i32
    %2 = arith.cmpi ne, %1, %c0_i32_0 : i32
    scf.if %2 {
      %c0_10 = arith.constant 0 : index
      %c0_11 = arith.constant 0 : index
      %12 = vector.load %arg4[%c0_10, %c0_11] : memref<1x128xf32, #tpu.memory_space<vmem>>, vector<1x128xf32>
      %13 = vector.shape_cast %12 : vector<1x128xf32> to vector<1x128xf32>
      %14 = vector.broadcast %13 : vector<1x128xf32> to vector<8x128xf32>
      %c0_12 = arith.constant 0 : index
      %c0_13 = arith.constant 0 : index
      %15 = vector.load %arg6[%c0_12, %c0_13] : memref<8x128xf32, #tpu.memory_space<vmem>>, vector<8x128xf32>
      tpu.vector_store %arg6[%c0_12, %c0_13], %14 {strides = array<i32>} : memref<8x128xf32, #tpu.memory_space<vmem>>, vector<8x128xf32>,
    } else {
    }
    %c0 = arith.constant 0 : index
    %c0_1 = arith.constant 0 : index
    %3 = vector.load %arg6[%c0, %c0_1] : memref<8x128xf32, #tpu.memory_space<vmem>>, vector<8x128xf32>
    %c0_2 = arith.constant 0 : index
    %c0_3 = arith.constant 0 : index
    %4 = vector.load %arg2[%c0_2, %c0_3] : memref<8x32xf32, #tpu.memory_space<vmem>>, vector<8x32xf32>
    %c0_4 = arith.constant 0 : index
    %c0_5 = arith.constant 0 : index
    %5 = vector.load %arg3[%c0_4, %c0_5] : memref<32x128xf32, #tpu.memory_space<vmem>>, vector<32x128xf32>
    %cst = arith.constant dense<0.000000e+00> : vector<8x128xf32>
    %6 = tpu.matmul %4, %5, %cst {dimension_numbers = #tpu.dot_dimension_numbers<[1], [0], [0], [1], [0, 0, 1, 1], [], []>} : vector<8x32xf32>, vector<32x128xf32>, vector<8x128xf32> -> vector<8x128xf32>
    %7 = arith.addf %3, %6 : vector<8x128xf32>
    %c0_6 = arith.constant 0 : index
    %c0_7 = arith.constant 0 : index
    %8 = vector.load %arg6[%c0_6, %c0_7] : memref<8x128xf32, #tpu.memory_space<vmem>>, vector<8x128xf32>
    tpu.vector_store %arg6[%c0_6, %c0_7], %7 {strides = array<i32>} : memref<8x128xf32, #tpu.memory_space<vmem>>, vector<8x128xf32>,
    %c0_i32_8 = arith.constant 0 : i32
    %9 = arith.cmpi eq, %arg1, %c0_i32_8 : i32
    %10 = arith.extui %9 : i1 to i32
    %c0_i32_9 = arith.constant 0 : i32
    %11 = arith.cmpi ne, %10, %c0_i32_9 : i32
    scf.if %11 {
      %c0_10 = arith.constant 0 : index
      %c0_11 = arith.constant 0 : index
      %12 = vector.load %arg6[%c0_10, %c0_11] : memref<8x128xf32, #tpu.memory_space<vmem>>, vector<8x128xf32>
      %13 = arith.negf %12 : vector<8x128xf32>
      %14 = math.exp %13 : vector<8x128xf32>
      %cst_12 = arith.constant 1.000000e+00 : f32
      %15 = vector.broadcast %cst_12 : f32 to vector<8x128xf32>
      %16 = arith.addf %15, %14 : vector<8x128xf32>
      %17 = arith.divf %15, %16 : vector<8x128xf32>
      %c0_13 = arith.constant 0 : index
      %c0_14 = arith.constant 0 : index
      %18 = vector.load %arg5[%c0_13, %c0_14] : memref<8x128xf32, #tpu.memory_space<vmem>>, vector<8x128xf32>
      tpu.vector_store %arg5[%c0_13, %c0_14], %17 {strides = array<i32>} : memref<8x128xf32, #tpu.memory_space<vmem>>, vector<8x128xf32>,
    } else {
    }
    return
  }
  func.func @transform_0(%arg0: i32, %arg1: i32) -> (i32, i32) {
    %c0_i32 = arith.constant 0 : i32
    return %arg0, %arg1 : i32, i32
  }
  func.func @transform_1(%arg0: i32, %arg1: i32) -> (i32, i32) {
    %c0_i32 = arith.constant 0 : i32
    %c0_i32_0 = arith.constant 0 : i32
    return %arg1, %c0_i32 : i32, i32
  }
  func.func @transform_2(%arg0: i32, %arg1: i32) -> (i32, i32) {
    %c0_i32 = arith.constant 0 : i32
    %c0_i32_0 = arith.constant 0 : i32
    %c0_i32_1 = arith.constant 0 : i32
    return %c0_i32, %c0_i32_0 : i32, i32
  }
  func.func @transform_3(%arg0: i32, %arg1: i32) -> (i32, i32) {
    %c0_i32 = arith.constant 0 : i32
    %c0_i32_0 = arith.constant 0 : i32
    return %arg0, %c0_i32 : i32, i32
  }
}

</mosaic_0001>

<llo_original>
// kernel: tpu_custom_call.1
$region0: #{tpu_custom_call.1}
  #allocation0 [shape = 'u32[]', space=smem, size = 0x4, offset = 0x4, fixed_abs, tag = 'smem constant byte address 0x4 - core index']
  #allocation1 [shape = 'u32[144,128]{1,0:T(1,128)}', space=vmem, size = 0x12000, scoped, tag = 'internal scratch']
  #allocation2 [shape = 'f32[8,128]{1,0:T(8,128)}', space=vmem, size = 0x1000, scoped, tag = 'scratch operand']
  %s0 = inlined_call_operand.hbm [shape: f32[8,32], index: 0, kind: input, shape index: {}]
  %s1 = inlined_call_operand.hbm [shape: f32[32,128], index: 1, kind: input, shape index: {}]
  %s2 = inlined_call_operand.vmem [shape: f32[1,128], index: 2, kind: input, shape index: {}]
  %s3 = inlined_call_operand.hbm [shape: f32[8,128], index: 3, kind: output, shape index: {}]
  %s4 = sld [smem:[#allocation0]]
  $region38: #{tpu_custom_call.1} parent=0
    _
  %s6 = ssub.s32 1, %s4
  %s7 = scalar_select 0, %s6, %s4
  $region1: #{tpu_custom_call.1} parent=0
    #allocation3 [shape = 'u8[4096]{0}', space=vmem, size = 0x1000, scoped, tag = 'input window, operand 0, single buffered']
    #allocation4 [shape = 's32[1]{0}', space=sflag, size = 0x4, scoped, tag = 'scoped memory for tpu_custom_call.1']
    #allocation5 [shape = 's32[1]{0}', space=sflag, size = 0x4, scoped, tag = 'scoped memory for tpu_custom_call.1']
    #allocation6 [shape = 'u8[16384]{0}', space=vmem, size = 0x4000, scoped, tag = 'input window, operand 1, single buffered']
    #allocation7 [shape = 's32[1]{0}', space=sflag, size = 0x4, scoped, tag = 'scoped memory for tpu_custom_call.1']
    #allocation8 [shape = 'u8[4096]{0}', space=vmem, size = 0x1000, scoped, tag = 'output window, operand 0, single buffered']
    %8 = vsyncpa [#allocation4], 0
    %9 = vsyncpa [#allocation7], 0
    %10 = vsyncpa [#allocation5], 0
    // Predicated region
    $region2: #{tpu_custom_call.1} parent=1 // pred_check
      _
    $region3: #{tpu_custom_call.1} parent=1 // pred_check_branch
      %12 = sbr.rel (0) target = $region5
    $region4: #{tpu_custom_call.1} parent=1 // pred_region
      %s14 = ssub.s32 128, 128
      %15 = vsyncadd [#allocation4], %s14
      %s17 = sshll.u32 [#allocation3], 4
      %s18 = int_to_ptr.vmem [resolvable:$true] %s17
      %20 = dma.hbm_to_vmem [thread:$0]  %s0, 128, %s18, [#allocation4]
    $region5: #{tpu_custom_call.1} parent=1 // pred_fallthru
      _
    // Predicated region
    $region6: #{tpu_custom_call.1} parent=1 // pred_check
      _
    $region7: #{tpu_custom_call.1} parent=1 // pred_check_branch
      %22 = sbr.rel (0) target = $region9
    $region8: #{tpu_custom_call.1} parent=1 // pred_region
      %s24 = ssub.s32 512, 512
      %25 = vsyncadd [#allocation7], %s24
      %s26 = sshll.u32 [#allocation6], 4
      %s27 = int_to_ptr.vmem [resolvable:$true] %s26
      %32 = dma.hbm_to_vmem [thread:$0]  %s1, 512, %s27, [#allocation7], 128, 128, 8
    $region9: #{tpu_custom_call.1} parent=1 // pred_fallthru
      _
    // Predicated region
    $region10: #{tpu_custom_call.1} parent=1 // pred_check
      _
    $region11: #{tpu_custom_call.1} parent=1 // pred_check_branch
      %34 = sbr.rel (0) target = $region13
    $region12: #{tpu_custom_call.1} parent=1 // pred_region
      _
    $region13: #{tpu_custom_call.1} parent=1 // pred_fallthru
      _
    // Predicated region
    $region14: #{tpu_custom_call.1} parent=1 // pred_check
      _
    $region15: #{tpu_custom_call.1} parent=1 // pred_check_branch
      %36 = sbr.rel (0) target = $region17
    $region16: #{tpu_custom_call.1} parent=1 // pred_region
      %37 = dma.done [#allocation4], 128
    $region17: #{tpu_custom_call.1} parent=1 // pred_fallthru
      _
    // Predicated region
    $region18: #{tpu_custom_call.1} parent=1 // pred_check
      _
    $region19: #{tpu_custom_call.1} parent=1 // pred_check_branch
      %39 = sbr.rel (0) target = $region21
    $region20: #{tpu_custom_call.1} parent=1 // pred_region
      %40 = dma.done [#allocation7], 512
    $region21: #{tpu_custom_call.1} parent=1 // pred_fallthru
      _
    %p41 = scmp.eq.s32.totalorder 0, 0
    // Predicated region
    $region22: #{tpu_custom_call.1} parent=1 // pred_check
      %p42 = pneg %p41
    $region23: #{tpu_custom_call.1} parent=1 // pred_check_branch
      %44 = sbr.rel (%p42) target = $region25
    $region24: #{tpu_custom_call.1} parent=1 // pred_region
      %v45 = vld [vmem:[%s2] sm:$0x1]
      %v47 = vlaneseq
      %v48 = vshrl.u32 %v47, 7
      %v49 = vsub.s32 0, %v48
      %v50 = vrot.slane %v45, %v49
      %52 = vst [vmem:[#allocation2] sm:$0xff] %v50
    $region25: #{tpu_custom_call.1} parent=1 // pred_fallthru
      _
    %v53 = vld [vmem:[#allocation2] sm:$0xff]
    %v54 = vld [vmem:[#allocation3] sm:$0xff]
    %v55 = vld [vmem:[#allocation6] sm:$0xff]
    %v56 = vld [vmem:[#allocation6 + $0x8] sm:$0xff]
    %v57 = vld [vmem:[#allocation6 + $0x10] sm:$0xff]
    %v58 = vld [vmem:[#allocation6 + $0x18] sm:$0xff]
    %vm59 = vcmask 261120
    %v61 = vsel %vm59, %v54, 0
    %63 = vmatprep.subr.mxu0 0.0
    %64 = vmatpush1.msra.mxu0 0.0
    %65 = vmatprep.subr.mxu0 0.0
    %66 = vmatpush1.msra.mxu0 0.0
    %67 = vmatprep.subr.mxu0 0.0
    %68 = vmatpush1.msra.mxu0 0.0
    %69 = vmatprep.subr.mxu0 0.0
    %70 = vmatpush1.msra.mxu0 0.0
    %71 = vmatprep.subr.mxu0 0.0
    %72 = vmatpush1.msra.mxu0 0.0
    %73 = vmatprep.subr.mxu0 0.0
    %74 = vmatpush1.msra.mxu0 0.0
    %75 = vmatprep.subr.mxu0 0.0
    %76 = vmatpush1.msra.mxu0 0.0
    %77 = vmatprep.subr.mxu0 0.0
    %78 = vmatpush1.msra.mxu0 0.0
    %79 = vmatprep.subr.mxu0 0.0
    %80 = vmatpush1.msra.mxu0 0.0
    %81 = vmatprep.subr.mxu0 0.0
    %82 = vmatpush1.msra.mxu0 0.0
    %83 = vmatprep.subr.mxu0 0.0
    %84 = vmatpush1.msra.mxu0 0.0
    %85 = vmatprep.subr.mxu0 0.0
    %86 = vmatpush1.msra.mxu0 0.0
    %87 = vmatprep.subr.mxu0 0.0
    %88 = vmatpush1.msra.mxu0 %v58
    %89 = vmatprep.subr.mxu0 0.0
    %90 = vmatpush1.msra.mxu0 %v57
    %91 = vmatprep.subr.mxu0 0.0
    %92 = vmatpush1.msra.mxu0 %v56
    %93 = vmatprep.subr.mxu0 0.0
    %94 = vmatpush1.msra.mxu0 %v55
    %95 = vmatprep.subr.mxu0 0.0
    %96 = vmatpush2.msra.mxu0 0.0
    %97 = vmatprep.subr.mxu0 0.0
    %98 = vmatpush2.msra.mxu0 0.0
    %99 = vmatprep.subr.mxu0 0.0
    %100 = vmatpush2.msra.mxu0 0.0
    %101 = vmatprep.subr.mxu0 0.0
    %102 = vmatpush2.msra.mxu0 0.0
    %103 = vmatprep.subr.mxu0 0.0
    %104 = vmatpush2.msra.mxu0 0.0
    %105 = vmatprep.subr.mxu0 0.0
    %106 = vmatpush2.msra.mxu0 0.0
    %107 = vmatprep.subr.mxu0 0.0
    %108 = vmatpush2.msra.mxu0 0.0
    %109 = vmatprep.subr.mxu0 0.0
    %110 = vmatpush2.msra.mxu0 0.0
    %111 = vmatprep.subr.mxu0 0.0
    %112 = vmatpush2.msra.mxu0 0.0
    %113 = vmatprep.subr.mxu0 0.0
    %114 = vmatpush2.msra.mxu0 0.0
    %115 = vmatprep.subr.mxu0 0.0
    %116 = vmatpush2.msra.mxu0 0.0
    %117 = vmatprep.subr.mxu0 0.0
    %118 = vmatpush2.msra.mxu0 0.0
    %119 = vmatprep.subr.mxu0 0.0
    %120 = vmatpush2.msra.mxu0 0.0
    %121 = vmatprep.subr.mxu0 0.0
    %122 = vmatpush2.msra.mxu0 0.0
    %123 = vmatprep.subr.mxu0 0.0
    %124 = vmatpush2.msra.mxu0 0.0
    %125 = vmatprep.subr.mxu0 0.0
    %126 = vmatpush2.msra.mxu0 0.0
    %127 = vmatprep.mubr.f32.mxu0 0.0
    %128 = vmatmul.mubr.f32.gmra.mxu0 %v61
    %v129 = vpop.f32.mrf.mxu0
    %v130 = vadd.f32 0.0, %v129
    %v131 = vpop.f32.mrf.mxu0
    %132 = vdwg.mxu0
    %v133 = vadd.f32 %v53, %v130
    %134 = vst [vmem:[#allocation2] sm:$0xff] %v133
    // Predicated region
    $region26: #{tpu_custom_call.1} parent=1 // pred_check
      %p135 = pneg %p41
    $region27: #{tpu_custom_call.1} parent=1 // pred_check_branch
      %137 = sbr.rel (%p135) target = $region29
    $region28: #{tpu_custom_call.1} parent=1 // pred_region
      %v138 = vld [vmem:[#allocation2] sm:$0xff]
      %v139 = vxor.u32 %v138, 2147483648
      %v140 = vmul.f32 %v139, 1.442695
      %v141 = vpow.pop %v140
      %v142 = vadd.f32 %v141, 1.0
      %v143 = vrcp.pop %v142
      %v144 = vmul.f32 1.0, %v143
      %145 = vst [vmem:[#allocation8] sm:$0xff] %v144
    $region29: #{tpu_custom_call.1} parent=1 // pred_fallthru
      _
    // Predicated region
    $region30: #{tpu_custom_call.1} parent=1 // pred_check
      _
    $region31: #{tpu_custom_call.1} parent=1 // pred_check_branch
      %147 = sbr.rel (0) target = $region33
    $region32: #{tpu_custom_call.1} parent=1 // pred_region
      %s149 = ssub.s32 128, 128
      %150 = vsyncadd [#allocation5], %s149
      %s152 = sshll.u32 [#allocation8], 4
      %s153 = int_to_ptr.vmem [resolvable:$true] %s152
      %155 = dma.vmem_to_hbm [thread:$0]  %s153, 128, %s3, [#allocation5]
    $region33: #{tpu_custom_call.1} parent=1 // pred_fallthru
      _
    // Predicated region
    $region34: #{tpu_custom_call.1} parent=1 // pred_check
      _
    $region35: #{tpu_custom_call.1} parent=1 // pred_check_branch
      %157 = sbr.rel (0) target = $region37
    $region36: #{tpu_custom_call.1} parent=1 // pred_region
      %158 = dma.done [#allocation5], 128
    $region37: #{tpu_custom_call.1} parent=1 // pred_fallthru
      _
    %159 = vsyncpa [#allocation4], 1
    %160 = vsyncpa [#allocation7], 1
    %161 = vsyncpa [#allocation5], 1

</llo_original>
